<compile_context>
chip_gen: v7x
topology: tpu7x:2x2x1
jax: 0.10.0
libtpu: 0.0.40
codegen_flags: <defaults>
</compile_context>

<pallas_src>
import functools
import math

import jax
import jax.numpy as jnp
from jax.experimental import pallas as pl
from jax.experimental.pallas import tpu as pltpu

_SQRT_HALF = math.sqrt(0.5)


def _attention_layer_kernel(
    dec_ref,    # (T, H)    f32   decoder states for this batch element
    te_ref,     # (T, Et)   f32   target embeddings
    es_ref,     # (S, Es)   bf16  encoder states (attention keys)
    ev_ref,     # (S, Es)   bf16  encoder vectors (attention values)
    bias_ref,   # (1, S)    f32   additive mask bias: 0 (valid) / -1e30 (masked)
    w1t_ref,    # (H, Et)   bf16  W1^T
    b1_ref,     # (1, Et)   f32
    w2t_ref,    # (Et, Es)  bf16  W2^T
    b2_ref,     # (1, Es)   f32
    w3t_ref,    # (Es, H)   bf16  W3^T
    b3_ref,     # (1, H)    f32
    out_ref,    # (T, H)    f32   context projection output
    attn_ref,   # (T, S)    f32   attention weights
    *, ctx_scale,
):
    bf16 = jnp.bfloat16
    f32 = jnp.float32

    # d = (dec @ W1^T + b1 + te) * sqrt(0.5)   (bias/residual adds + scale in f32)
    d = (jnp.dot(dec_ref[...].astype(bf16), w1t_ref[...],
                 preferred_element_type=f32)
         + b1_ref[...] + te_ref[...]) * _SQRT_HALF

    # q = d @ W2^T + b2
    q = jnp.dot(d.astype(bf16), w2t_ref[...],
                preferred_element_type=f32) + b2_ref[...]

    # scores[t, s] = sum_e q[t, e] * es[s, e]   (+ additive mask bias)
    scores = jnp.einsum('te,se->ts', q.astype(bf16), es_ref[...],
                        preferred_element_type=f32) + bias_ref[...]

    # Numerically stable softmax over S (all in f32, exact division).
    m = jnp.max(scores, axis=-1, keepdims=True)
    p = jnp.exp(scores - m)
    attn = p / jnp.sum(p, axis=-1, keepdims=True)
    attn_ref[...] = attn.astype(attn_ref.dtype)

    # context = (attn @ encoder_vectors) * (S * sqrt(1/S)); then @ W3^T + b3
    ctx = jnp.einsum('ts,se->te', attn.astype(bf16), ev_ref[...],
                     preferred_element_type=f32) * ctx_scale
    out = jnp.dot(ctx.astype(bf16), w3t_ref[...],
                  preferred_element_type=f32) + b3_ref[...]
    out_ref[...] = out.astype(out_ref.dtype)


def attention_layer_forward(decoder_states, target_embed, encoder_states_in,
                            encoder_vectors, encoder_mask, params):
    """Time-major inputs (PyTorch layout) -> (context (T,B,H), attn (B,T,S))."""
    T, B, H = decoder_states.shape
    S, _, Es = encoder_states_in.shape
    Et = target_embed.shape[-1]
    f32, bf16 = jnp.float32, jnp.bfloat16

    # --- glue (plain JAX, no padding, minimal copies). In a real model keep the
    # activations batch-major upstream and these transposes disappear.
    dec_b = jnp.transpose(decoder_states.astype(f32), (1, 0, 2))      # (B,T,H)
    te_b = jnp.transpose(target_embed.astype(f32), (1, 0, 2))         # (B,T,Et)
    es_b = jnp.transpose(encoder_states_in, (1, 0, 2)).astype(bf16)   # (B,S,Es)
    ev_b = jnp.transpose(encoder_vectors, (1, 0, 2)).astype(bf16)     # (B,S,Es)
    # Additive mask bias: 0 where valid, -1e30 where masked.
    bias_b = (jnp.transpose(encoder_mask.astype(f32), (1, 0))[:, None, :]
              - 1.0) * 1e30                                           # (B,1,S)

    # Pre-transposed bf16 weights, f32 biases (one-time, parameter-load work).
    w1, b1, w2, b2, w3, b3 = params
    w1t = w1.T.astype(bf16)                    # (H, Et)
    w2t = w2.T.astype(bf16)                    # (Et, Es)
    w3t = w3.T.astype(bf16)                    # (Es, H)
    b1p = b1.reshape(1, -1).astype(f32)        # (1, Et)
    b2p = b2.reshape(1, -1).astype(f32)        # (1, Es)
    b3p = b3.reshape(1, -1).astype(f32)        # (1, H)

    ctx_scale = float(S * math.sqrt(1.0 / S))

    # Batched specs: squeeze the batch dim; every other dim uses its full extent
    # (legal even when not (8,128)-aligned), so nothing needs padding.
    batched = lambda s: pl.BlockSpec((None,) + s, lambda b: (b, 0, 0))
    # Shared specs: constant index_map -> weights are DMA'd once, stay resident.
    shared = lambda s: pl.BlockSpec(s, lambda b: (0, 0))

    kernel = functools.partial(_attention_layer_kernel, ctx_scale=ctx_scale)

    out_b, attn = pl.pallas_call(
        kernel,
        out_shape=(jax.ShapeDtypeStruct((B, T, H), f32),
                   jax.ShapeDtypeStruct((B, T, S), f32)),
        grid=(B,),
        in_specs=[
            batched((T, H)),       # dec
            batched((T, Et)),      # te
            batched((S, Es)),      # es
            batched((S, Es)),      # ev
            batched((1, S)),       # mask bias
            shared((H, Et)),       # w1t
            shared((1, Et)),       # b1
            shared((Et, Es)),      # w2t
            shared((1, Es)),       # b2
            shared((Es, H)),       # w3t
            shared((1, H)),        # b3
        ],
        out_specs=(batched((T, H)),    # context (batch-major)
                   batched((T, S))),   # attn
        compiler_params=pltpu.CompilerParams(
            dimension_semantics=("parallel",)),
    )(dec_b, te_b, es_b, ev_b, bias_b, w1t, b1p, w2t, b2p, w3t, b3p)

    context = jnp.transpose(out_b, (1, 0, 2))   # back to time-major (T, B, H)
    return context, attn


def _reference_forward(decoder_states, target_embed, encoder_states_in,
                       encoder_vectors, encoder_mask, params):
    """Pure-JAX reference mirroring the PyTorch module, using the same
    bf16-operand / f32-accumulate matmul precision as the kernel."""
    w1, b1, w2, b2, w3, b3 = params
    S = encoder_states_in.shape[0]
    bf16, f32 = jnp.bfloat16, jnp.float32

    d = (jnp.einsum('tbh,eh->tbe', decoder_states.astype(bf16), w1.astype(bf16),
                    preferred_element_type=f32)
         + b1 + target_embed) * math.sqrt(0.5)
    q = jnp.einsum('tbe,fe->tbf', d.astype(bf16), w2.astype(bf16),
                   preferred_element_type=f32) + b2
    scores = jnp.einsum('tbf,sbf->bts', q.astype(bf16),
                        encoder_states_in.astype(bf16),
                        preferred_element_type=f32)
    bias = (jnp.transpose(encoder_mask.astype(f32), (1, 0))[:, None, :]
            - 1.0) * 1e30
    scores = scores + bias
    m = jnp.max(scores, axis=-1, keepdims=True)
    p = jnp.exp(scores - m)
    attn = p / jnp.sum(p, axis=-1, keepdims=True)
    ctx = jnp.einsum('bts,sbf->tbf', attn.astype(bf16),
                     encoder_vectors.astype(bf16),
                     preferred_element_type=f32)
    ctx = ctx * (S * math.sqrt(1.0 / S))
    context = jnp.einsum('tbf,hf->tbh', ctx.astype(bf16), w3.astype(bf16),
                         preferred_element_type=f32) + b3
    return context, attn


def _init_params(key, H, Et, Es):
    ks = jax.random.split(key, 6)

    def lin(kw, kb, out_dim, in_dim):
        bound = 1.0 / math.sqrt(in_dim)
        w = jax.random.uniform(kw, (out_dim, in_dim), jnp.float32, -bound, bound)
        b = jax.random.uniform(kb, (out_dim,), jnp.float32, -bound, bound)
        return w, b

    w1, b1 = lin(ks[0], ks[1], Et, H)   # decoder_state_embed_proj: H  -> Et
    w2, b2 = lin(ks[2], ks[3], Es, Et)  # attention projection:     Et -> Es
    w3, b3 = lin(ks[4], ks[5], H, Es)   # context_proj:             Es -> H
    return (w1, b1, w2, b2, w3, b3)


if __name__ == "__main__":
    T, B, H = 8, 2, 32     # decoder time steps, batch, hidden_size
    S = 10                 # encoder time steps
    Et, Es = 16, 24        # target_embed_size, source_embed_size

    key = jax.random.PRNGKey(0)
    k = jax.random.split(key, 5)
    decoder_states = jax.random.normal(k[0], (T, B, H), jnp.float32)
    target_embed = jax.random.normal(k[1], (T, B, Et), jnp.float32)
    encoder_states_in = jax.random.normal(k[2], (S, B, Es), jnp.float32)
    encoder_vectors = jax.random.normal(k[3], (S, B, Es), jnp.float32)
    # mask: 1 = valid, 0 = padded (last two encoder steps of batch 1 padded)
    encoder_mask = jnp.ones((S, B), jnp.float32).at[S - 2:, 1].set(0.0)

    params = _init_params(k[4], H, Et, Es)

    context, attn = attention_layer_forward(
        decoder_states, target_embed, encoder_states_in, encoder_vectors,
        encoder_mask, params)
    context = jax.block_until_ready(context)
    attn = jax.block_until_ready(attn)

    ref_ctx, ref_attn = _reference_forward(
        decoder_states, target_embed, encoder_states_in, encoder_vectors,
        encoder_mask, params)

    assert context.shape == (T, B, H) and attn.shape == (B, T, S)
    assert bool(jnp.all(jnp.isfinite(attn))) and bool(jnp.all(jnp.isfinite(context)))
    # Attention rows are normalized and masked positions get ~0 weight.
    row_sums = jnp.sum(attn, axis=-1)
    assert jnp.allclose(row_sums, jnp.ones_like(row_sums), atol=1e-3)
    assert float(jnp.max(attn[1, :, S - 2:])) < 1e-6
    # Kernel vs. precision-matched reference (bf16 matmul operands, f32 accum).
    assert jnp.allclose(attn, ref_attn, atol=3e-3, rtol=3e-2)
    assert jnp.allclose(context, ref_ctx, atol=2e-2, rtol=3e-2)
    print("KERNEL_OK")
</pallas_src>

<mosaic_0001>
module attributes {stable_mosaic.version = 11 : i64} {
  func.func @_attention_layer_kernel(%arg0: i32, %arg1: memref<1x8x32xf32, #tpu.memory_space<vmem>>, %arg2: memref<1x8x16xf32, #tpu.memory_space<vmem>>, %arg3: memref<1x10x24xbf16, #tpu.memory_space<vmem>>, %arg4: memref<1x10x24xbf16, #tpu.memory_space<vmem>>, %arg5: memref<1x1x10xf32, #tpu.memory_space<vmem>>, %arg6: memref<32x16xbf16, #tpu.memory_space<vmem>>, %arg7: memref<1x16xf32, #tpu.memory_space<vmem>>, %arg8: memref<16x24xbf16, #tpu.memory_space<vmem>>, %arg9: memref<1x24xf32, #tpu.memory_space<vmem>>, %arg10: memref<24x32xbf16, #tpu.memory_space<vmem>>, %arg11: memref<1x32xf32, #tpu.memory_space<vmem>>, %arg12: memref<1x8x32xf32, #tpu.memory_space<vmem>>, %arg13: memref<1x8x10xf32, #tpu.memory_space<vmem>>) attributes {dimension_semantics = [#tpu.dimension_semantics<parallel>], iteration_bounds = array<i64: 2>, scalar_prefetch = 0 : i64, scratch_operands = 0 : i64, tpu.core_type = #tpu.core_type<tc>, window_params = [{transform_indices = @transform_0, window_bounds = array<i64: 1, 8, 32>}, {transform_indices = @transform_1, window_bounds = array<i64: 1, 8, 16>}, {transform_indices = @transform_2, window_bounds = array<i64: 1, 10, 24>}, {transform_indices = @transform_3, window_bounds = array<i64: 1, 10, 24>}, {transform_indices = @transform_4, window_bounds = array<i64: 1, 1, 10>}, {pipeline_mode = #tpu.pipeline_mode<synchronous>, transform_indices = @transform_5, window_bounds = array<i64: 32, 16>}, {pipeline_mode = #tpu.pipeline_mode<synchronous>, transform_indices = @transform_6, window_bounds = array<i64: 1, 16>}, {pipeline_mode = #tpu.pipeline_mode<synchronous>, transform_indices = @transform_7, window_bounds = array<i64: 16, 24>}, {pipeline_mode = #tpu.pipeline_mode<synchronous>, transform_indices = @transform_8, window_bounds = array<i64: 1, 24>}, {pipeline_mode = #tpu.pipeline_mode<synchronous>, transform_indices = @transform_9, window_bounds = array<i64: 24, 32>}, {pipeline_mode = #tpu.pipeline_mode<synchronous>, transform_indices = @transform_10, window_bounds = array<i64: 1, 32>}, {transform_indices = @transform_11, window_bounds = array<i64: 1, 8, 32>}, {transform_indices = @transform_12, window_bounds = array<i64: 1, 8, 10>}]} {
    %c0 = arith.constant 0 : index
    %c0_0 = arith.constant 0 : index
    %c0_1 = arith.constant 0 : index
    %0 = vector.load %arg1[%c0, %c0_0, %c0_1] : memref<1x8x32xf32, #tpu.memory_space<vmem>>, vector<1x8x32xf32>
    %1 = vector.shape_cast %0 : vector<1x8x32xf32> to vector<8x32xf32>
    %2 = arith.truncf %1 : vector<8x32xf32> to vector<8x32xbf16>
    %c0_2 = arith.constant 0 : index
    %c0_3 = arith.constant 0 : index
    %3 = vector.load %arg6[%c0_2, %c0_3] : memref<32x16xbf16, #tpu.memory_space<vmem>>, vector<32x16xbf16>
    %cst = arith.constant dense<0.000000e+00> : vector<8x16xf32>
    %4 = tpu.matmul %2, %3, %cst {dimension_numbers = #tpu.dot_dimension_numbers<[1], [0], [0], [1], [0, 0, 1, 1], [], []>} : vector<8x32xbf16>, vector<32x16xbf16>, vector<8x16xf32> -> vector<8x16xf32>
    %c0_4 = arith.constant 0 : index
    %c0_5 = arith.constant 0 : index
    %5 = vector.load %arg7[%c0_4, %c0_5] : memref<1x16xf32, #tpu.memory_space<vmem>>, vector<1x16xf32>
    %6 = vector.broadcast %5 : vector<1x16xf32> to vector<8x16xf32>
    %7 = arith.addf %4, %6 : vector<8x16xf32>
    %c0_6 = arith.constant 0 : index
    %c0_7 = arith.constant 0 : index
    %c0_8 = arith.constant 0 : index
    %8 = vector.load %arg2[%c0_6, %c0_7, %c0_8] : memref<1x8x16xf32, #tpu.memory_space<vmem>>, vector<1x8x16xf32>
    %9 = vector.shape_cast %8 : vector<1x8x16xf32> to vector<8x16xf32>
    %10 = arith.addf %7, %9 : vector<8x16xf32>
    %cst_9 = arith.constant 0.707106769 : f32
    %11 = vector.broadcast %cst_9 : f32 to vector<8x16xf32>
    %12 = arith.mulf %10, %11 : vector<8x16xf32>
    %13 = arith.truncf %12 : vector<8x16xf32> to vector<8x16xbf16>
    %c0_10 = arith.constant 0 : index
    %c0_11 = arith.constant 0 : index
    %14 = vector.load %arg8[%c0_10, %c0_11] : memref<16x24xbf16, #tpu.memory_space<vmem>>, vector<16x24xbf16>
    %cst_12 = arith.constant dense<0.000000e+00> : vector<8x24xf32>
    %15 = tpu.matmul %13, %14, %cst_12 {dimension_numbers = #tpu.dot_dimension_numbers<[1], [0], [0], [1], [0, 0, 1, 1], [], []>} : vector<8x16xbf16>, vector<16x24xbf16>, vector<8x24xf32> -> vector<8x24xf32>
    %c0_13 = arith.constant 0 : index
    %c0_14 = arith.constant 0 : index
    %16 = vector.load %arg9[%c0_13, %c0_14] : memref<1x24xf32, #tpu.memory_space<vmem>>, vector<1x24xf32>
    %17 = vector.broadcast %16 : vector<1x24xf32> to vector<8x24xf32>
    %18 = arith.addf %15, %17 : vector<8x24xf32>
    %19 = arith.truncf %18 : vector<8x24xf32> to vector<8x24xbf16>
    %c0_15 = arith.constant 0 : index
    %c0_16 = arith.constant 0 : index
    %c0_17 = arith.constant 0 : index
    %20 = vector.load %arg3[%c0_15, %c0_16, %c0_17] : memref<1x10x24xbf16, #tpu.memory_space<vmem>>, vector<1x10x24xbf16>
    %21 = vector.shape_cast %20 : vector<1x10x24xbf16> to vector<10x24xbf16>
    "tpu.trace_start"() <{level = 10 : i32, message = "te,se->ts"}> : () -> ()
    %cst_18 = arith.constant dense<0.000000e+00> : vector<8x10xf32>
    %22 = tpu.matmul %19, %21, %cst_18 {dimension_numbers = #tpu.dot_dimension_numbers<[1], [1], [0], [0], [0, 0, 1, 0], [], []>} : vector<8x24xbf16>, vector<10x24xbf16>, vector<8x10xf32> -> vector<8x10xf32>
    "tpu.trace_stop"() : () -> ()
    %c0_19 = arith.constant 0 : index
    %c0_20 = arith.constant 0 : index
    %c0_21 = arith.constant 0 : index
    %23 = vector.load %arg5[%c0_19, %c0_20, %c0_21] : memref<1x1x10xf32, #tpu.memory_space<vmem>>, vector<1x1x10xf32>
    %24 = vector.shape_cast %23 : vector<1x1x10xf32> to vector<1x10xf32>
    %25 = vector.broadcast %24 : vector<1x10xf32> to vector<8x10xf32>
    %26 = arith.addf %22, %25 : vector<8x10xf32>
    %cst_22 = arith.constant dense<0xFF800000> : vector<8xf32>
    %27 = vector.multi_reduction <maximumf>, %26, %cst_22 [1] : vector<8x10xf32> to vector<8xf32>
    %28 = vector.shape_cast %27 : vector<8xf32> to vector<8x1xf32>
    %29 = vector.broadcast %28 : vector<8x1xf32> to vector<8x10xf32>
    %30 = arith.subf %26, %29 : vector<8x10xf32>
    %31 = math.exp %30 : vector<8x10xf32>
    %cst_23 = arith.constant dense<0.000000e+00> : vector<8xf32>
    %32 = vector.multi_reduction <add>, %31, %cst_23 [1] : vector<8x10xf32> to vector<8xf32>
    %33 = vector.shape_cast %32 : vector<8xf32> to vector<8x1xf32>
    %34 = vector.broadcast %33 : vector<8x1xf32> to vector<8x10xf32>
    %35 = arith.divf %31, %34 : vector<8x10xf32>
    %c0_24 = arith.constant 0 : index
    %c0_25 = arith.constant 0 : index
    %c0_26 = arith.constant 0 : index
    %36 = vector.load %arg13[%c0_24, %c0_25, %c0_26] : memref<1x8x10xf32, #tpu.memory_space<vmem>>, vector<1x8x10xf32>
    %37 = vector.shape_cast %36 : vector<1x8x10xf32> to vector<8x10xf32>
    %38 = vector.shape_cast %35 : vector<8x10xf32> to vector<1x8x10xf32>
    tpu.vector_store %arg13[%c0_24, %c0_25, %c0_26], %38 {strides = array<i32>} : memref<1x8x10xf32, #tpu.memory_space<vmem>>, vector<1x8x10xf32>,
    %39 = arith.truncf %35 : vector<8x10xf32> to vector<8x10xbf16>
    %c0_27 = arith.constant 0 : index
    %c0_28 = arith.constant 0 : index
    %c0_29 = arith.constant 0 : index
    %40 = vector.load %arg4[%c0_27, %c0_28, %c0_29] : memref<1x10x24xbf16, #tpu.memory_space<vmem>>, vector<1x10x24xbf16>
    %41 = vector.shape_cast %40 : vector<1x10x24xbf16> to vector<10x24xbf16>
    "tpu.trace_start"() <{level = 10 : i32, message = "ts,se->te"}> : () -> ()
    %cst_30 = arith.constant dense<0.000000e+00> : vector<8x24xf32>
    %42 = tpu.matmul %39, %41, %cst_30 {dimension_numbers = #tpu.dot_dimension_numbers<[1], [0], [0], [1], [0, 0, 1, 1], [], []>} : vector<8x10xbf16>, vector<10x24xbf16>, vector<8x24xf32> -> vector<8x24xf32>
    "tpu.trace_stop"() : () -> ()
    %cst_31 = arith.constant 3.1622777 : f32
    %43 = vector.broadcast %cst_31 : f32 to vector<8x24xf32>
    %44 = arith.mulf %42, %43 : vector<8x24xf32>
    %45 = arith.truncf %44 : vector<8x24xf32> to vector<8x24xbf16>
    %c0_32 = arith.constant 0 : index
    %c0_33 = arith.constant 0 : index
    %46 = vector.load %arg10[%c0_32, %c0_33] : memref<24x32xbf16, #tpu.memory_space<vmem>>, vector<24x32xbf16>
    %cst_34 = arith.constant dense<0.000000e+00> : vector<8x32xf32>
    %47 = tpu.matmul %45, %46, %cst_34 {dimension_numbers = #tpu.dot_dimension_numbers<[1], [0], [0], [1], [0, 0, 1, 1], [], []>} : vector<8x24xbf16>, vector<24x32xbf16>, vector<8x32xf32> -> vector<8x32xf32>
    %c0_35 = arith.constant 0 : index
    %c0_36 = arith.constant 0 : index
    %48 = vector.load %arg11[%c0_35, %c0_36] : memref<1x32xf32, #tpu.memory_space<vmem>>, vector<1x32xf32>
    %49 = vector.broadcast %48 : vector<1x32xf32> to vector<8x32xf32>
    %50 = arith.addf %47, %49 : vector<8x32xf32>
    %c0_37 = arith.constant 0 : index
    %c0_38 = arith.constant 0 : index
    %c0_39 = arith.constant 0 : index
    %51 = vector.load %arg12[%c0_37, %c0_38, %c0_39] : memref<1x8x32xf32, #tpu.memory_space<vmem>>, vector<1x8x32xf32>
    %52 = vector.shape_cast %51 : vector<1x8x32xf32> to vector<8x32xf32>
    %53 = vector.shape_cast %50 : vector<8x32xf32> to vector<1x8x32xf32>
    tpu.vector_store %arg12[%c0_37, %c0_38, %c0_39], %53 {strides = array<i32>} : memref<1x8x32xf32, #tpu.memory_space<vmem>>, vector<1x8x32xf32>,
    return
  }
  func.func @transform_0(%arg0: i32) -> (i32, i32, i32) {
    %c0_i32 = arith.constant 0 : i32
    %c0_i32_0 = arith.constant 0 : i32
    %c0_i32_1 = arith.constant 0 : i32
    return %arg0, %c0_i32, %c0_i32_0 : i32, i32, i32
  }
  func.func @transform_1(%arg0: i32) -> (i32, i32, i32) {
    %c0_i32 = arith.constant 0 : i32
    %c0_i32_0 = arith.constant 0 : i32
    %c0_i32_1 = arith.constant 0 : i32
    return %arg0, %c0_i32, %c0_i32_0 : i32, i32, i32
  }
  func.func @transform_2(%arg0: i32) -> (i32, i32, i32) {
    %c0_i32 = arith.constant 0 : i32
    %c0_i32_0 = arith.constant 0 : i32
    %c0_i32_1 = arith.constant 0 : i32
    return %arg0, %c0_i32, %c0_i32_0 : i32, i32, i32
  }
  func.func @transform_3(%arg0: i32) -> (i32, i32, i32) {
    %c0_i32 = arith.constant 0 : i32
    %c0_i32_0 = arith.constant 0 : i32
    %c0_i32_1 = arith.constant 0 : i32
    return %arg0, %c0_i32, %c0_i32_0 : i32, i32, i32
  }
  func.func @transform_4(%arg0: i32) -> (i32, i32, i32) {
    %c0_i32 = arith.constant 0 : i32
    %c0_i32_0 = arith.constant 0 : i32
    %c0_i32_1 = arith.constant 0 : i32
    return %arg0, %c0_i32, %c0_i32_0 : i32, i32, i32
  }
  func.func @transform_5(%arg0: i32) -> (i32, i32) {
    %c0_i32 = arith.constant 0 : i32
    %c0_i32_0 = arith.constant 0 : i32
    %c0_i32_1 = arith.constant 0 : i32
    return %c0_i32, %c0_i32_0 : i32, i32
  }
  func.func @transform_6(%arg0: i32) -> (i32, i32) {
    %c0_i32 = arith.constant 0 : i32
    %c0_i32_0 = arith.constant 0 : i32
    %c0_i32_1 = arith.constant 0 : i32
    return %c0_i32, %c0_i32_0 : i32, i32
  }
  func.func @transform_7(%arg0: i32) -> (i32, i32) {
    %c0_i32 = arith.constant 0 : i32
    %c0_i32_0 = arith.constant 0 : i32
    %c0_i32_1 = arith.constant 0 : i32
    return %c0_i32, %c0_i32_0 : i32, i32
  }
  func.func @transform_8(%arg0: i32) -> (i32, i32) {
    %c0_i32 = arith.constant 0 : i32
    %c0_i32_0 = arith.constant 0 : i32
    %c0_i32_1 = arith.constant 0 : i32
    return %c0_i32, %c0_i32_0 : i32, i32
  }
  func.func @transform_9(%arg0: i32) -> (i32, i32) {
    %c0_i32 = arith.constant 0 : i32
    %c0_i32_0 = arith.constant 0 : i32
    %c0_i32_1 = arith.constant 0 : i32
    return %c0_i32, %c0_i32_0 : i32, i32
  }
  func.func @transform_10(%arg0: i32) -> (i32, i32) {
    %c0_i32 = arith.constant 0 : i32
    %c0_i32_0 = arith.constant 0 : i32
    %c0_i32_1 = arith.constant 0 : i32
    return %c0_i32, %c0_i32_0 : i32, i32
  }
  func.func @transform_11(%arg0: i32) -> (i32, i32, i32) {
    %c0_i32 = arith.constant 0 : i32
    %c0_i32_0 = arith.constant 0 : i32
    %c0_i32_1 = arith.constant 0 : i32
    return %arg0, %c0_i32, %c0_i32_0 : i32, i32, i32
  }
  func.func @transform_12(%arg0: i32) -> (i32, i32, i32) {
    %c0_i32 = arith.constant 0 : i32
    %c0_i32_0 = arith.constant 0 : i32
    %c0_i32_1 = arith.constant 0 : i32
    return %arg0, %c0_i32, %c0_i32_0 : i32, i32, i32
  }
}

</mosaic_0001>

<llo_original>
// kernel: tpu_custom_call.1
$region0: #{tpu_custom_call.1}
  #allocation0 [shape = 'u32[]', space=smem, size = 0x4, offset = 0x4, fixed_abs, tag = 'smem constant byte address 0x4 - core index']
  #allocation1 [shape = 'u32[144,128]{1,0:T(1,128)}', space=vmem, size = 0x12000, scoped, tag = 'internal scratch']
  %s0 = inlined_call_operand.vmem [shape: f32[2,8,32], index: 0, kind: input, shape index: {}]
  %s1 = inlined_call_operand.vmem [shape: f32[2,8,16], index: 1, kind: input, shape index: {}]
  %s2 = inlined_call_operand.vmem [shape: bf16[2,10,24], index: 2, kind: input, shape index: {}]
  %s3 = inlined_call_operand.vmem [shape: bf16[2,10,24], index: 3, kind: input, shape index: {}]
  %s4 = inlined_call_operand.vmem [shape: f32[2,1,10], index: 4, kind: input, shape index: {}]
  %s5 = inlined_call_operand.vmem [shape: bf16[32,16], index: 5, kind: input, shape index: {}]
  %s6 = inlined_call_operand.vmem [shape: f32[1,16], index: 6, kind: input, shape index: {}]
  %s7 = inlined_call_operand.vmem [shape: bf16[16,24], index: 7, kind: input, shape index: {}]
  %s8 = inlined_call_operand.vmem [shape: f32[1,24], index: 8, kind: input, shape index: {}]
  %s9 = inlined_call_operand.vmem [shape: bf16[24,32], index: 9, kind: input, shape index: {}]
  %s10 = inlined_call_operand.vmem [shape: f32[1,32], index: 10, kind: input, shape index: {}]
  %s11 = inlined_call_operand.hbm [shape: f32[2,8,32], index: 11, kind: output, shape index: {0}]
  %s12 = inlined_call_operand.hbm [shape: f32[2,8,10], index: 12, kind: output, shape index: {1}]
  %13 = xla_tuple %s11, %s12
  %s14 = sld [smem:[#allocation0]]
  $region85: #{tpu_custom_call.1} parent=0
    _
  %s16 = ssub.s32 1, %s14
  %s17 = scalar_select 0, %s16, %s14
  $region1: #{tpu_custom_call.1} parent=0
    #allocation2 [shape = 'u8[8192]{0}', space=vmem, size = 0x2000, scoped, tag = 'output window, operand 0']
    #allocation3 [shape = 's32[2]{0}', space=sflag, size = 0x8, scoped, tag = 'scoped memory for tpu_custom_call.1']
    #allocation4 [shape = 'u8[8192]{0}', space=vmem, size = 0x2000, scoped, tag = 'output window, operand 1']
    #allocation5 [shape = 's32[2]{0}', space=sflag, size = 0x8, scoped, tag = 'scoped memory for tpu_custom_call.1']
    %18 = vsyncpa [#allocation3], 0
    %s19 = scalar_lea.sflag [#allocation3], 1
    %20 = vsyncpa %s19, 0
    %21 = vsyncpa [#allocation5], 0
    %s22 = scalar_lea.sflag [#allocation5], 1
    %23 = vsyncpa %s22, 0
    loop: start=0, step=1, limit=4
    $region2: #{tpu_custom_call.1} parent=1 // loop_pre_header
      _
    $region3: #{tpu_custom_call.1} parent=1 // loop_header
      %s25 = sphi 0, %s29
      %p26 = scmp.ge.s32.totalorder %s25, 4
      %s35 = sphi 0, %s37
      %s38 = sphi 0, %s35
      %s39 = sphi 0, %s38
      %s55 = sphi 0, %s39
      %s61 = sphi 0, %s63
      %s64 = sphi 0, %s61
      %s65 = sphi 0, %s64
      %s81 = sphi 0, %s65
      %s87 = sphi 0, %s89
      %s90 = sphi 0, %s87
      %s91 = sphi 0, %s90
      %s107 = sphi 0, %s91
      %s113 = sphi 0, %s115
      %s116 = sphi 0, %s113
      %s117 = sphi 0, %s116
      %s133 = sphi 0, %s117
      %s139 = sphi 0, %s141
      %s142 = sphi 0, %s139
      %s143 = sphi 0, %s142
      %s159 = sphi 0, %s143
      %s163 = sphi 0, %s163
      %s165 = sphi 0, %s163
      %s166 = sphi 0, %s165
      %s180 = sphi 0, %s166
      %s184 = sphi 0, %s184
      %s186 = sphi 0, %s184
      %s187 = sphi 0, %s186
      %s201 = sphi 0, %s187
      %s205 = sphi 0, %s205
      %s207 = sphi 0, %s205
      %s208 = sphi 0, %s207
      %s222 = sphi 0, %s208
      %s226 = sphi 0, %s226
      %s228 = sphi 0, %s226
      %s229 = sphi 0, %s228
      %s243 = sphi 0, %s229
      %s247 = sphi 0, %s247
      %s249 = sphi 0, %s247
      %s250 = sphi 0, %s249
      %s264 = sphi 0, %s250
      %s268 = sphi 0, %s268
      %s270 = sphi 0, %s268
      %s271 = sphi 0, %s270
      %s285 = sphi 0, %s271
      %s291 = sphi 0, %s293
      %s294 = sphi 0, %s291
      %s295 = sphi 0, %s294
      %s311 = sphi 0, %s295
      %s317 = sphi 0, %s319
      %s320 = sphi 0, %s317
      %s321 = sphi 0, %s320
      %s337 = sphi 0, %s321
    $region4: #{tpu_custom_call.1} parent=1 // loop_header_branch
      %28 = sbr.rel (%p26) target = $region8
    $region5: #{tpu_custom_call.1} parent=1 // loop_body
      %s30 = ssub.s32 %s25, 1
      %s31 = ssub.s32 %s25, 2
      %s32 = sadd.s32 %s25, 1
      %s33 = ssub.s32 %s25, %s32
      %p34 = scmp.eq.s32.totalorder %s33, 0
      %s36 = sadd.s32 %s35, 1
      %s37 = scalar_select %p34, %s35, %s36
      %p40 = pneg %p34
      %p41 = scmp.eq.s32.totalorder %s25, 1
      %p42 = por %p40, %p41
      %p43 = scmp.ne.s32.totalorder %s35, %s38
      %p44 = scmp.eq.s32.totalorder %s25, 0
      %p45 = por %p43, %p44
      %p46 = scmp.ne.s32.totalorder %s35, %s38
      %p47 = scmp.eq.s32.totalorder %s30, 1
      %p48 = por %p46, %p47
      %p49 = scmp.ne.s32.totalorder %s38, %s39
      %p50 = scmp.eq.s32.totalorder %s30, 0
      %p51 = por %p49, %p50
      %p52 = scmp.ne.s32.totalorder %s38, %s39
      %p53 = scmp.eq.s32.totalorder %s31, 1
      %p54 = por %p52, %p53
      %p56 = scmp.ne.s32.totalorder %s39, %s55
      %p57 = scmp.eq.s32.totalorder %s31, 0
      %p58 = por %p56, %p57
      %s59 = ssub.s32 %s25, %s32
      %p60 = scmp.eq.s32.totalorder %s59, 0
      %s62 = sadd.s32 %s61, 1
      %s63 = scalar_select %p60, %s61, %s62
      %p66 = pneg %p60
      %p67 = scmp.eq.s32.totalorder %s25, 1
      %p68 = por %p66, %p67
      %p69 = scmp.ne.s32.totalorder %s61, %s64
      %p70 = scmp.eq.s32.totalorder %s25, 0
      %p71 = por %p69, %p70
      %p72 = scmp.ne.s32.totalorder %s61, %s64
      %p73 = scmp.eq.s32.totalorder %s30, 1
      %p74 = por %p72, %p73
      %p75 = scmp.ne.s32.totalorder %s64, %s65
      %p76 = scmp.eq.s32.totalorder %s30, 0
      %p77 = por %p75, %p76
      %p78 = scmp.ne.s32.totalorder %s64, %s65
      %p79 = scmp.eq.s32.totalorder %s31, 1
      %p80 = por %p78, %p79
      %p82 = scmp.ne.s32.totalorder %s65, %s81
      %p83 = scmp.eq.s32.totalorder %s31, 0
      %p84 = por %p82, %p83
      %s85 = ssub.s32 %s25, %s32
      %p86 = scmp.eq.s32.totalorder %s85, 0
      %s88 = sadd.s32 %s87, 1
      %s89 = scalar_select %p86, %s87, %s88
      %p92 = pneg %p86
      %p93 = scmp.eq.s32.totalorder %s25, 1
      %p94 = por %p92, %p93
      %p95 = scmp.ne.s32.totalorder %s87, %s90
      %p96 = scmp.eq.s32.totalorder %s25, 0
      %p97 = por %p95, %p96
      %p98 = scmp.ne.s32.totalorder %s87, %s90
      %p99 = scmp.eq.s32.totalorder %s30, 1
      %p100 = por %p98, %p99
      %p101 = scmp.ne.s32.totalorder %s90, %s91
      %p102 = scmp.eq.s32.totalorder %s30, 0
      %p103 = por %p101, %p102
      %p104 = scmp.ne.s32.totalorder %s90, %s91
      %p105 = scmp.eq.s32.totalorder %s31, 1
      %p106 = por %p104, %p105
      %p108 = scmp.ne.s32.totalorder %s91, %s107
      %p109 = scmp.eq.s32.totalorder %s31, 0
      %p110 = por %p108, %p109
      %s111 = ssub.s32 %s25, %s32
      %p112 = scmp.eq.s32.totalorder %s111, 0
      %s114 = sadd.s32 %s113, 1
      %s115 = scalar_select %p112, %s113, %s114
      %p118 = pneg %p112
      %p119 = scmp.eq.s32.totalorder %s25, 1
      %p120 = por %p118, %p119
      %p121 = scmp.ne.s32.totalorder %s113, %s116
      %p122 = scmp.eq.s32.totalorder %s25, 0
      %p123 = por %p121, %p122
      %p124 = scmp.ne.s32.totalorder %s113, %s116
      %p125 = scmp.eq.s32.totalorder %s30, 1
      %p126 = por %p124, %p125
      %p127 = scmp.ne.s32.totalorder %s116, %s117
      %p128 = scmp.eq.s32.totalorder %s30, 0
      %p129 = por %p127, %p128
      %p130 = scmp.ne.s32.totalorder %s116, %s117
      %p131 = scmp.eq.s32.totalorder %s31, 1
      %p132 = por %p130, %p131
      %p134 = scmp.ne.s32.totalorder %s117, %s133
      %p135 = scmp.eq.s32.totalorder %s31, 0
      %p136 = por %p134, %p135
      %s137 = ssub.s32 %s25, %s32
      %p138 = scmp.eq.s32.totalorder %s137, 0
      %s140 = sadd.s32 %s139, 1
      %s141 = scalar_select %p138, %s139, %s140
      %p144 = pneg %p138
      %p145 = scmp.eq.s32.totalorder %s25, 1
      %p146 = por %p144, %p145
      %p147 = scmp.ne.s32.totalorder %s139, %s142
      %p148 = scmp.eq.s32.totalorder %s25, 0
      %p149 = por %p147, %p148
      %p150 = scmp.ne.s32.totalorder %s139, %s142
      %p151 = scmp.eq.s32.totalorder %s30, 1
      %p152 = por %p150, %p151
      %p153 = scmp.ne.s32.totalorder %s142, %s143
      %p154 = scmp.eq.s32.totalorder %s30, 0
      %p155 = por %p153, %p154
      %p156 = scmp.ne.s32.totalorder %s142, %s143
      %p157 = scmp.eq.s32.totalorder %s31, 1
      %p158 = por %p156, %p157
      %p160 = scmp.ne.s32.totalorder %s143, %s159
      %p161 = scmp.eq.s32.totalorder %s31, 0
      %p162 = por %p160, %p161
      %s164 = sadd.s32 %s163, 1
      %p167 = scmp.eq.s32.totalorder %s25, 1
      %p168 = scmp.ne.s32.totalorder %s163, %s165
      %p169 = scmp.eq.s32.totalorder %s25, 0
      %p170 = por %p168, %p169
      %p171 = scmp.ne.s32.totalorder %s163, %s165
      %p172 = scmp.eq.s32.totalorder %s30, 1
      %p173 = por %p171, %p172
      %p174 = scmp.ne.s32.totalorder %s165, %s166
      %p175 = scmp.eq.s32.totalorder %s30, 0
      %p176 = por %p174, %p175
      %p177 = scmp.ne.s32.totalorder %s165, %s166
      %p178 = scmp.eq.s32.totalorder %s31, 1
      %p179 = por %p177, %p178
      %p181 = scmp.ne.s32.totalorder %s166, %s180
      %p182 = scmp.eq.s32.totalorder %s31, 0
      %p183 = por %p181, %p182
      %s185 = sadd.s32 %s184, 1
      %p188 = scmp.eq.s32.totalorder %s25, 1
      %p189 = scmp.ne.s32.totalorder %s184, %s186
      %p190 = scmp.eq.s32.totalorder %s25, 0
      %p191 = por %p189, %p190
      %p192 = scmp.ne.s32.totalorder %s184, %s186
      %p193 = scmp.eq.s32.totalorder %s30, 1
      %p194 = por %p192, %p193
      %p195 = scmp.ne.s32.totalorder %s186, %s187
      %p196 = scmp.eq.s32.totalorder %s30, 0
      %p197 = por %p195, %p196
      %p198 = scmp.ne.s32.totalorder %s186, %s187
      %p199 = scmp.eq.s32.totalorder %s31, 1
      %p200 = por %p198, %p199
      %p202 = scmp.ne.s32.totalorder %s187, %s201
      %p203 = scmp.eq.s32.totalorder %s31, 0
      %p204 = por %p202, %p203
      %s206 = sadd.s32 %s205, 1
      %p209 = scmp.eq.s32.totalorder %s25, 1
      %p210 = scmp.ne.s32.totalorder %s205, %s207
      %p211 = scmp.eq.s32.totalorder %s25, 0
      %p212 = por %p210, %p211
      %p213 = scmp.ne.s32.totalorder %s205, %s207
      %p214 = scmp.eq.s32.totalorder %s30, 1
      %p215 = por %p213, %p214
      %p216 = scmp.ne.s32.totalorder %s207, %s208
      %p217 = scmp.eq.s32.totalorder %s30, 0
      %p218 = por %p216, %p217
      %p219 = scmp.ne.s32.totalorder %s207, %s208
      %p220 = scmp.eq.s32.totalorder %s31, 1
      %p221 = por %p219, %p220
      %p223 = scmp.ne.s32.totalorder %s208, %s222
      %p224 = scmp.eq.s32.totalorder %s31, 0
      %p225 = por %p223, %p224
      %s227 = sadd.s32 %s226, 1
      %p230 = scmp.eq.s32.totalorder %s25, 1
      %p231 = scmp.ne.s32.totalorder %s226, %s228
      %p232 = scmp.eq.s32.totalorder %s25, 0
      %p233 = por %p231, %p232
      %p234 = scmp.ne.s32.totalorder %s226, %s228
      %p235 = scmp.eq.s32.totalorder %s30, 1
      %p236 = por %p234, %p235
      %p237 = scmp.ne.s32.totalorder %s228, %s229
      %p238 = scmp.eq.s32.totalorder %s30, 0
      %p239 = por %p237, %p238
      %p240 = scmp.ne.s32.totalorder %s228, %s229
      %p241 = scmp.eq.s32.totalorder %s31, 1
      %p242 = por %p240, %p241
      %p244 = scmp.ne.s32.totalorder %s229, %s243
      %p245 = scmp.eq.s32.totalorder %s31, 0
      %p246 = por %p244, %p245
      %s248 = sadd.s32 %s247, 1
      %p251 = scmp.eq.s32.totalorder %s25, 1
      %p252 = scmp.ne.s32.totalorder %s247, %s249
      %p253 = scmp.eq.s32.totalorder %s25, 0
      %p254 = por %p252, %p253
      %p255 = scmp.ne.s32.totalorder %s247, %s249
      %p256 = scmp.eq.s32.totalorder %s30, 1
      %p257 = por %p255, %p256
      %p258 = scmp.ne.s32.totalorder %s249, %s250
      %p259 = scmp.eq.s32.totalorder %s30, 0
      %p260 = por %p258, %p259
      %p261 = scmp.ne.s32.totalorder %s249, %s250
      %p262 = scmp.eq.s32.totalorder %s31, 1
      %p263 = por %p261, %p262
      %p265 = scmp.ne.s32.totalorder %s250, %s264
      %p266 = scmp.eq.s32.totalorder %s31, 0
      %p267 = por %p265, %p266
      %s269 = sadd.s32 %s268, 1
      %p272 = scmp.eq.s32.totalorder %s25, 1
      %p273 = scmp.ne.s32.totalorder %s268, %s270
      %p274 = scmp.eq.s32.totalorder %s25, 0
      %p275 = por %p273, %p274
      %p276 = scmp.ne.s32.totalorder %s268, %s270
      %p277 = scmp.eq.s32.totalorder %s30, 1
      %p278 = por %p276, %p277
      %p279 = scmp.ne.s32.totalorder %s270, %s271
      %p280 = scmp.eq.s32.totalorder %s30, 0
      %p281 = por %p279, %p280
      %p282 = scmp.ne.s32.totalorder %s270, %s271
      %p283 = scmp.eq.s32.totalorder %s31, 1
      %p284 = por %p282, %p283
      %p286 = scmp.ne.s32.totalorder %s271, %s285
      %p287 = scmp.eq.s32.totalorder %s31, 0
      %p288 = por %p286, %p287
      %s289 = ssub.s32 %s25, %s32
      %p290 = scmp.eq.s32.totalorder %s289, 0
      %s292 = sadd.s32 %s291, 1
      %s293 = scalar_select %p290, %s291, %s292
      %p296 = pneg %p290
      %p297 = scmp.eq.s32.totalorder %s25, 1
      %p298 = por %p296, %p297
      %p299 = scmp.ne.s32.totalorder %s291, %s294
      %p300 = scmp.eq.s32.totalorder %s25, 0
      %p301 = por %p299, %p300
      %p302 = scmp.ne.s32.totalorder %s291, %s294
      %p303 = scmp.eq.s32.totalorder %s30, 1
      %p304 = por %p302, %p303
      %p305 = scmp.ne.s32.totalorder %s294, %s295
      %p306 = scmp.eq.s32.totalorder %s30, 0
      %p307 = por %p305, %p306
      %p308 = scmp.ne.s32.totalorder %s294, %s295
      %p309 = scmp.eq.s32.totalorder %s31, 1
      %p310 = por %p308, %p309
      %p312 = scmp.ne.s32.totalorder %s295, %s311
      %p313 = scmp.eq.s32.totalorder %s31, 0
      %p314 = por %p312, %p313
      %s315 = ssub.s32 %s25, %s32
      %p316 = scmp.eq.s32.totalorder %s315, 0
      %s318 = sadd.s32 %s317, 1
      %s319 = scalar_select %p316, %s317, %s318
      %p322 = pneg %p316
      %p323 = scmp.eq.s32.totalorder %s25, 1
      %p324 = por %p322, %p323
      %p325 = scmp.ne.s32.totalorder %s317, %s320
      %p326 = scmp.eq.s32.totalorder %s25, 0
      %p327 = por %p325, %p326
      %p328 = scmp.ne.s32.totalorder %s317, %s320
      %p329 = scmp.eq.s32.totalorder %s30, 1
      %p330 = por %p328, %p329
      %p331 = scmp.ne.s32.totalorder %s320, %s321
      %p332 = scmp.eq.s32.totalorder %s30, 0
      %p333 = por %p331, %p332
      %p334 = scmp.ne.s32.totalorder %s320, %s321
      %p335 = scmp.eq.s32.totalorder %s31, 1
      %p336 = por %p334, %p335
      %p338 = scmp.ne.s32.totalorder %s321, %s337
      %p339 = scmp.eq.s32.totalorder %s31, 0
      %p340 = por %p338, %p339
      %p341 = scmp.le.s32.totalorder 1, %s25
      %p342 = scmp.lt.s32.totalorder %s25, 3
      %p343 = pnand %p341, %p342
      %p344 = pneg %p343
      // Predicated region
      $region9: #{tpu_custom_call.1} parent=5 // pred_check
        _
      $region10: #{tpu_custom_call.1} parent=5 // pred_check_branch
        %346 = sbr.rel (%p343) target = $region12
      $region11: #{tpu_custom_call.1} parent=5 // pred_region
        %s347 = ssub.s32 %s25, 1
        // Predicated region
        $region13: #{tpu_custom_call.1} parent=11 // pred_check
          %p348 = pneg %p176
        $region14: #{tpu_custom_call.1} parent=11 // pred_check_branch
          %350 = sbr.rel (%p348) target = $region16
        $region15: #{tpu_custom_call.1} parent=11 // pred_region
          _
        $region16: #{tpu_custom_call.1} parent=11 // pred_fallthru
          _
        // Predicated region
        $region17: #{tpu_custom_call.1} parent=11 // pred_check
          %p351 = pneg %p197
        $region18: #{tpu_custom_call.1} parent=11 // pred_check_branch
          %353 = sbr.rel (%p351) target = $region20
        $region19: #{tpu_custom_call.1} parent=11 // pred_region
          _
        $region20: #{tpu_custom_call.1} parent=11 // pred_fallthru
          _
        // Predicated region
        $region21: #{tpu_custom_call.1} parent=11 // pred_check
          %p354 = pneg %p218
        $region22: #{tpu_custom_call.1} parent=11 // pred_check_branch
          %356 = sbr.rel (%p354) target = $region24
        $region23: #{tpu_custom_call.1} parent=11 // pred_region
          _
        $region24: #{tpu_custom_call.1} parent=11 // pred_fallthru
          _
        // Predicated region
        $region25: #{tpu_custom_call.1} parent=11 // pred_check
          %p357 = pneg %p239
        $region26: #{tpu_custom_call.1} parent=11 // pred_check_branch
          %359 = sbr.rel (%p357) target = $region28
        $region27: #{tpu_custom_call.1} parent=11 // pred_region
          _
        $region28: #{tpu_custom_call.1} parent=11 // pred_fallthru
          _
        // Predicated region
        $region29: #{tpu_custom_call.1} parent=11 // pred_check
          %p360 = pneg %p260
        $region30: #{tpu_custom_call.1} parent=11 // pred_check_branch
          %362 = sbr.rel (%p360) target = $region32
        $region31: #{tpu_custom_call.1} parent=11 // pred_region
          _
        $region32: #{tpu_custom_call.1} parent=11 // pred_fallthru
          _
        // Predicated region
        $region33: #{tpu_custom_call.1} parent=11 // pred_check
          %p363 = pneg %p281
        $region34: #{tpu_custom_call.1} parent=11 // pred_check_branch
          %365 = sbr.rel (%p363) target = $region36
        $region35: #{tpu_custom_call.1} parent=11 // pred_region
          _
        $region36: #{tpu_custom_call.1} parent=11 // pred_fallthru
          _
      $region12: #{tpu_custom_call.1} parent=5 // pred_fallthru
        _
      %p366 = scmp.lt.s32.totalorder %s25, 2
      // Predicated region
      $region37: #{tpu_custom_call.1} parent=5 // pred_check
        %p367 = pneg %p366
      $region38: #{tpu_custom_call.1} parent=5 // pred_check_branch
        %369 = sbr.rel (%p367) target = $region40
      $region39: #{tpu_custom_call.1} parent=5 // pred_region
        // Predicated region
        $region41: #{tpu_custom_call.1} parent=39 // pred_check
          %p370 = pneg %p45
        $region42: #{tpu_custom_call.1} parent=39 // pred_check_branch
          %372 = sbr.rel (%p370) target = $region44
        $region43: #{tpu_custom_call.1} parent=39 // pred_region
          %p373 = scmp.lt.s32.totalorder %s25, 1
          %s374 = scalar_select %p373, %s25, 1
          %s375 = smul.addr %s374, 8
          %s376 = scalar_lea.vmem %s0, %s375
        $region44: #{tpu_custom_call.1} parent=39 // pred_fallthru
          _
        // Predicated region
        $region45: #{tpu_custom_call.1} parent=39 // pred_check
          %p377 = pneg %p71
        $region46: #{tpu_custom_call.1} parent=39 // pred_check_branch
          %379 = sbr.rel (%p377) target = $region48
        $region47: #{tpu_custom_call.1} parent=39 // pred_region
          %p380 = scmp.lt.s32.totalorder %s25, 1
          %s381 = scalar_select %p380, %s25, 1
          %s382 = smul.addr %s381, 8
          %s383 = scalar_lea.vmem %s1, %s382
        $region48: #{tpu_custom_call.1} parent=39 // pred_fallthru
          _
        // Predicated region
        $region49: #{tpu_custom_call.1} parent=39 // pred_check
          %p384 = pneg %p97
        $region50: #{tpu_custom_call.1} parent=39 // pred_check_branch
          %386 = sbr.rel (%p384) target = $region52
        $region51: #{tpu_custom_call.1} parent=39 // pred_region
          %p387 = scmp.lt.s32.totalorder %s25, 1
          %s388 = scalar_select %p387, %s25, 1
          %s389 = smul.addr %s388, 2
          %s390 = smul.addr %s389, 4
          %s391 = scalar_lea.vmem %s2, %s390
        $region52: #{tpu_custom_call.1} parent=39 // pred_fallthru
          _
        // Predicated region
        $region53: #{tpu_custom_call.1} parent=39 // pred_check
          %p392 = pneg %p123
        $region54: #{tpu_custom_call.1} parent=39 // pred_check_branch
          %394 = sbr.rel (%p392) target = $region56
        $region55: #{tpu_custom_call.1} parent=39 // pred_region
          %p395 = scmp.lt.s32.totalorder %s25, 1
          %s396 = scalar_select %p395, %s25, 1
          %s397 = smul.addr %s396, 2
          %s398 = smul.addr %s397, 4
          %s399 = scalar_lea.vmem %s3, %s398
        $region56: #{tpu_custom_call.1} parent=39 // pred_fallthru
          _
        // Predicated region
        $region57: #{tpu_custom_call.1} parent=39 // pred_check
          %p400 = pneg %p149
        $region58: #{tpu_custom_call.1} parent=39 // pred_check_branch
          %402 = sbr.rel (%p400) target = $region60
        $region59: #{tpu_custom_call.1} parent=39 // pred_region
          %p403 = scmp.lt.s32.totalorder %s25, 1
          %s404 = scalar_select %p403, %s25, 1
          %s405 = scalar_lea.vmem %s4, %s404
        $region60: #{tpu_custom_call.1} parent=39 // pred_fallthru
          _
      $region40: #{tpu_custom_call.1} parent=5 // pred_fallthru
        _
      %p406 = scmp.le.s32.totalorder 1, %s25
      %p407 = scmp.lt.s32.totalorder %s25, 3
      %p408 = pnand %p406, %p407
      %p409 = pneg %p408
      // Predicated region
      $region61: #{tpu_custom_call.1} parent=5 // pred_check
        _
      $region62: #{tpu_custom_call.1} parent=5 // pred_check_branch
        %411 = sbr.rel (%p408) target = $region64
      $region63: #{tpu_custom_call.1} parent=5 // pred_region
        %s412 = ssub.s32 %s25, 1
        %p413 = scmp.lt.s32.totalorder %s30, 1
        %s414 = scalar_select %p413, %s30, 1
        %s415 = smul.addr %s414, 8
        %s416 = scalar_lea.vmem %s0, %s415
        %p417 = pneg %p51
        %p418 = pneg %p48
        %p419 = scmp.lt.s32.totalorder %s30, 1
        %s420 = scalar_select %p419, %s30, 1
        %s421 = smul.addr %s420, 8
        %s422 = scalar_lea.vmem %s1, %s421
        %p423 = pneg %p77
        %p424 = pneg %p74
        %p425 = scmp.lt.s32.totalorder %s30, 1
        %s426 = scalar_select %p425, %s30, 1
        %s427 = smul.addr %s426, 2
        %s428 = smul.addr %s427, 4
        %s429 = scalar_lea.vmem %s2, %s428
        %p430 = pneg %p103
        %p431 = pneg %p100
        %p432 = scmp.lt.s32.totalorder %s30, 1
        %s433 = scalar_select %p432, %s30, 1
        %s434 = smul.addr %s433, 2
        %s435 = smul.addr %s434, 4
        %s436 = scalar_lea.vmem %s3, %s435
        %p437 = pneg %p129
        %p438 = pneg %p126
        %p439 = scmp.lt.s32.totalorder %s30, 1
        %s440 = scalar_select %p439, %s30, 1
        %s441 = scalar_lea.vmem %s4, %s440
        %p442 = pneg %p155
        %p443 = pneg %p152
        %p444 = pneg %p176
        %p445 = pneg %p173
        %p446 = pneg %p197
        %p447 = pneg %p194
        %p448 = pneg %p218
        %p449 = pneg %p215
        %p450 = pneg %p239
        %p451 = pneg %p236
        %p452 = pneg %p260
        %p453 = pneg %p257
        %p454 = pneg %p281
        %p455 = pneg %p278
        %p456 = pneg %p307
        %p457 = pneg %p304
        %s458 = sand.u32 %s294, 1
        %s459 = scalar_lea.sflag [#allocation3], %s458
        %s460 = sand.u32 %s294, 1
        %s461 = smul.addr %s460, 8
        %s462 = scalar_lea.vmem [#allocation2], %s461
        %p463 = pneg %p333
        %p464 = pneg %p330
        %s465 = sand.u32 %s320, 1
        %s466 = scalar_lea.sflag [#allocation5], %s465
        %s467 = sand.u32 %s320, 1
        %s468 = smul.addr %s467, 8
        %s469 = scalar_lea.vmem [#allocation4], %s468
        %p470 = scmp.lt.s32.totalorder %s30, 1
        %s471 = scalar_select %p470, %s30, 1
        %s472 = smul.addr %s471, 8
        %s473 = scalar_lea.vmem %s0, %s472
        %p474 = scmp.lt.s32.totalorder %s30, 1
        %s475 = scalar_select %p474, %s30, 1
        %s476 = smul.addr %s475, 8
        %s477 = scalar_lea.vmem %s1, %s476
        %p478 = scmp.lt.s32.totalorder %s30, 1
        %s479 = scalar_select %p478, %s30, 1
        %s480 = smul.addr %s479, 2
        %s481 = smul.addr %s480, 4
        %s482 = scalar_lea.vmem %s2, %s481
        %p483 = scmp.lt.s32.totalorder %s30, 1
        %s484 = scalar_select %p483, %s30, 1
        %s485 = smul.addr %s484, 2
        %s486 = smul.addr %s485, 4
        %s487 = scalar_lea.vmem %s3, %s486
        %p488 = scmp.lt.s32.totalorder %s30, 1
        %s489 = scalar_select %p488, %s30, 1
        %s490 = scalar_lea.vmem %s4, %s489
        %v492 = vld [vmem:[%s473] sm:$0xff]
        %v493 = vpack.c.bf16 %v492, %v492
        %v494 = vld [vmem:[%s5] sm:$0xf]
        %v495 = vld [vmem:[%s5 + $0x4] sm:$0xf]
        %v496 = vld [vmem:[%s5 + $0x8] sm:$0xf]
        %v497 = vld [vmem:[%s5 + $0xc] sm:$0xf]
        %v498 = vld [vmem:[%s6] sm:$0x1]
        %v500 = vlaneseq
        %v501 = vshrl.u32 %v500, 7
        %v502 = vsub.s32 0, %v501
        %v503 = vrot.slane %v498, %v502
        %v509 = vunpack.c.l.b16 %v494
        %v510 = vunpack.c.l.b16 %v495
        %v511 = vunpack.c.l.b16 %v496
        %v512 = vunpack.c.l.b16 %v497
        %v513 = vpack.c.b16 %v510, %v509
        %v514 = vpack.c.b16 %v512, %v511
        %vm517 = vcmask 261120
        %v519 = vsel %vm517, %v493, 0
        %521 = vmatprep.subr.bf16.mxu0 0
        %522 = vmatpush1.bf16.msra.mxu0 %v513
        %523 = vmatprep.subr.bf16.mxu0 0
        %524 = vmatpush1.bf16.msra.mxu0 %v514
        %525 = vmatprep.subr.bf16.mxu0 0
        %526 = vmatpush1.bf16.msra.mxu0 0
        %527 = vmatprep.subr.bf16.mxu0 0
        %528 = vmatpush1.bf16.msra.mxu0 0
        %529 = vmatprep.subr.bf16.mxu0 0
        %530 = vmatpush1.bf16.msra.mxu0 0
        %531 = vmatprep.subr.bf16.mxu0 0
        %532 = vmatpush1.bf16.msra.mxu0 0
        %533 = vmatprep.subr.bf16.mxu0 0
        %534 = vmatpush1.bf16.msra.mxu0 0
        %535 = vmatprep.subr.bf16.mxu0 0
        %536 = vmatpush1.bf16.msra.mxu0 0
        %537 = vmatprep.subr.bf16.mxu0 0
        %538 = vmatpush1.bf16.msra.mxu0 0
        %539 = vmatprep.subr.bf16.mxu0 0
        %540 = vmatpush1.bf16.msra.mxu0 0
        %541 = vmatprep.subr.bf16.mxu0 0
        %542 = vmatpush1.bf16.msra.mxu0 0
        %543 = vmatprep.subr.bf16.mxu0 0
        %544 = vmatpush1.bf16.msra.mxu0 0
        %545 = vmatprep.subr.bf16.mxu0 0
        %546 = vmatpush1.bf16.msra.mxu0 0
        %547 = vmatprep.subr.bf16.mxu0 0
        %548 = vmatpush1.bf16.msra.mxu0 0
        %549 = vmatprep.subr.bf16.mxu0 0
        %550 = vmatpush1.bf16.msra.mxu0 0
        %551 = vmatprep.subr.bf16.mxu0 0
        %552 = vmatpush1.bf16.msra.mxu0 0
        %553 = vmatprep.mubr.bf16.mxu0 0
        %554 = vmatmul.mubr.bf16.gmra.mrb[0].mxu0 %v519
        %v555 = vpop.f32.mrb[0].mxu0
        %v556 = vadd.f32 %v503, %v555
        %v557 = vpop.f32.mrb[0].mxu0
        %v558 = vpop.f32.mrb[0].mxu0
        %v559 = vpop.f32.mrb[0].mxu0
        %560 = vdwg.mxu0
        %v561 = vld [vmem:[%s477] sm:$0xff]
        %v562 = vadd.f32 %v556, %v561
        %v563 = vmul.f32 %v562, 0.70710677
        %v564 = vpack.c.bf16 %v563, %v563
        %v565 = vld [vmem:[%s7] sm:$0xf]
        %v566 = vld [vmem:[%s7 + $0x4] sm:$0xf]
        %v567 = vld [vmem:[%s8] sm:$0x1]
        %v569 = vlaneseq
        %v570 = vshrl.u32 %v569, 7
        %v571 = vsub.s32 0, %v570
        %v572 = vrot.slane %v567, %v571
        %v576 = vunpack.c.l.b16 %v565
        %v577 = vunpack.c.l.b16 %v566
        %v578 = vpack.c.b16 %v577, %v576
        %vm580 = vcmask 130048
        %v582 = vsel %vm580, %v564, 0
        %584 = vmatprep.subr.bf16.mxu0 0
        %585 = vmatpush1.bf16.msra.mxu0 %v578
        %586 = vmatprep.subr.bf16.mxu0 0
        %587 = vmatpush1.bf16.msra.mxu0 0
        %588 = vmatprep.subr.bf16.mxu0 0
        %589 = vmatpush1.bf16.msra.mxu0 0
        %590 = vmatprep.subr.bf16.mxu0 0
        %591 = vmatpush1.bf16.msra.mxu0 0
        %592 = vmatprep.subr.bf16.mxu0 0
        %593 = vmatpush1.bf16.msra.mxu0 0
        %594 = vmatprep.subr.bf16.mxu0 0
        %595 = vmatpush1.bf16.msra.mxu0 0
        %596 = vmatprep.subr.bf16.mxu0 0
        %597 = vmatpush1.bf16.msra.mxu0 0
        %598 = vmatprep.subr.bf16.mxu0 0
        %599 = vmatpush1.bf16.msra.mxu0 0
        %600 = vmatprep.subr.bf16.mxu0 0
        %601 = vmatpush1.bf16.msra.mxu0 0
        %602 = vmatprep.subr.bf16.mxu0 0
        %603 = vmatpush1.bf16.msra.mxu0 0
        %604 = vmatprep.subr.bf16.mxu0 0
        %605 = vmatpush1.bf16.msra.mxu0 0
        %606 = vmatprep.subr.bf16.mxu0 0
        %607 = vmatpush1.bf16.msra.mxu0 0
        %608 = vmatprep.subr.bf16.mxu0 0
        %609 = vmatpush1.bf16.msra.mxu0 0
        %610 = vmatprep.subr.bf16.mxu0 0
        %611 = vmatpush1.bf16.msra.mxu0 0
        %612 = vmatprep.subr.bf16.mxu0 0
        %613 = vmatpush1.bf16.msra.mxu0 0
        %614 = vmatprep.subr.bf16.mxu0 0
        %615 = vmatpush1.bf16.msra.mxu0 0
        %616 = vmatprep.mubr.bf16.mxu0 0
        %617 = vmatmul.mubr.bf16.gmra.mrb[0].mxu0 %v582
        %v618 = vpop.f32.mrb[0].mxu0
        %v619 = vadd.f32 %v572, %v618
        %v620 = vpop.f32.mrb[0].mxu0
        %v621 = vpop.f32.mrb[0].mxu0
        %v622 = vpop.f32.mrb[0].mxu0
        %623 = vdwg.mxu0
        %v624 = vpack.c.bf16 %v619, %v619
        %v625 = vld [vmem:[%s482] sm:$0xf]
        %v626 = vld [vmem:[%s482 + $0x4] sm:$0x1]
        %v627 = vld [vmem:[%s490] sm:$0x1]
        %v629 = vlaneseq
        %v630 = vshrl.u32 %v629, 7
        %v631 = vsub.s32 0, %v630
        %v632 = vrot.slane %v627, %v631
        %v636 = vunpack.c.l.b16 %v625
        %v637 = vunpack.c.l.b16 %v626
        %v638 = vpack.c.b16 %v637, %v636
        %vm639 = vcmask 195584
        %v641 = vsel %vm639, %v624, 0
        %v644 = vsel %vm639, %v638, 0
        %646 = vmatprep.subr.bf16.mxu0 0
        %647 = vmatpush1.bf16.xpose.msra.mxu0 %v644
        %648 = vmatprep.subr.bf16.mxu0 0
        %649 = vmatpush1.bf16.xpose.msra.mxu0 0
        %650 = vmatprep.subr.bf16.mxu0 0
        %651 = vmatpush1.bf16.xpose.msra.mxu0 0
        %652 = vmatprep.subr.bf16.mxu0 0
        %653 = vmatpush1.bf16.xpose.msra.mxu0 0
        %654 = vmatprep.subr.bf16.mxu0 0
        %655 = vmatpush1.bf16.xpose.msra.mxu0 0
        %656 = vmatprep.subr.bf16.mxu0 0
        %657 = vmatpush1.bf16.xpose.msra.mxu0 0
        %658 = vmatprep.subr.bf16.mxu0 0
        %659 = vmatpush1.bf16.xpose.msra.mxu0 0
        %660 = vmatprep.subr.bf16.mxu0 0
        %661 = vmatpush1.bf16.xpose.msra.mxu0 0
        %662 = vmatprep.subr.bf16.mxu0 0
        %663 = vmatpush1.bf16.xpose.msra.mxu0 0
        %664 = vmatprep.subr.bf16.mxu0 0
        %665 = vmatpush1.bf16.xpose.msra.mxu0 0
        %666 = vmatprep.subr.bf16.mxu0 0
        %667 = vmatpush1.bf16.xpose.msra.mxu0 0
        %668 = vmatprep.subr.bf16.mxu0 0
        %669 = vmatpush1.bf16.xpose.msra.mxu0 0
        %670 = vmatprep.subr.bf16.mxu0 0
        %671 = vmatpush1.bf16.xpose.msra.mxu0 0
        %672 = vmatprep.subr.bf16.mxu0 0
        %673 = vmatpush1.bf16.xpose.msra.mxu0 0
        %674 = vmatprep.subr.bf16.mxu0 0
        %675 = vmatpush1.bf16.xpose.msra.mxu0 0
        %676 = vmatprep.subr.bf16.mxu0 0
        %677 = vmatpush1.bf16.xpose.msra.mxu0 0
        %678 = vmatprep.mubr.bf16.mxu0 0
        %679 = vmatmul.mubr.bf16.gmra.mrb[0].mxu0 %v641
        %v680 = vpop.f32.mrb[0].mxu0
        %v681 = vadd.f32 %v632, %v680
        %v682 = vpop.f32.mrb[0].mxu0
        %v683 = vpop.f32.mrb[0].mxu0
        %v684 = vpop.f32.mrb[0].mxu0
        %685 = vdwg.mxu0
        %vm686 = vcmask 80896
        %v687 = vsel %vm686, %v681, -inf
        %688 = vmax.xlane.f32.xlu0 %v687
        %v689 = vpop.xlane.xlu0 %688
        %v690 = vsub.f32 %v681, %v689
        %v691 = vmul.f32 %v690, 1.442695
        %v692 = vpow.pop %v691
        %v693 = vsel %vm686, %v692, 0.0
        %694 = vadd.xlane.f32.xlu0 %v693
        %v695 = vpop.xlane.xlu0 %694
        %v696 = vrcp.pop %v695
        %v697 = vmul.f32 %v692, %v696
        %698 = vst.msk [vmem:[%s469] sm:$0xff] %vm686, %v697
        %v699 = vpack.c.bf16 %v697, %v697
        %v700 = vld [vmem:[%s487] sm:$0xf]
        %v701 = vld [vmem:[%s487 + $0x4] sm:$0x1]
        %v704 = vunpack.c.l.b16 %v700
        %v705 = vunpack.c.l.b16 %v701
        %v706 = vpack.c.b16 %v705, %v704
        %v708 = vsel %vm686, %v699, 0
        %vm710 = vcmask 1044480
        %v712 = vsel %vm710, %v706, 0
        %714 = vmatprep.subr.bf16.mxu0 0
        %715 = vmatpush1.bf16.msra.mxu0 %v712
        %716 = vmatprep.subr.bf16.mxu0 0
        %717 = vmatpush1.bf16.msra.mxu0 0
        %718 = vmatprep.subr.bf16.mxu0 0
        %719 = vmatpush1.bf16.msra.mxu0 0
        %720 = vmatprep.subr.bf16.mxu0 0
        %721 = vmatpush1.bf16.msra.mxu0 0
        %722 = vmatprep.subr.bf16.mxu0 0
        %723 = vmatpush1.bf16.msra.mxu0 0
        %724 = vmatprep.subr.bf16.mxu0 0
        %725 = vmatpush1.bf16.msra.mxu0 0
        %726 = vmatprep.subr.bf16.mxu0 0
        %727 = vmatpush1.bf16.msra.mxu0 0
        %728 = vmatprep.subr.bf16.mxu0 0
        %729 = vmatpush1.bf16.msra.mxu0 0
        %730 = vmatprep.subr.bf16.mxu0 0
        %731 = vmatpush1.bf16.msra.mxu0 0
        %732 = vmatprep.subr.bf16.mxu0 0
        %733 = vmatpush1.bf16.msra.mxu0 0
        %734 = vmatprep.subr.bf16.mxu0 0
        %735 = vmatpush1.bf16.msra.mxu0 0
        %736 = vmatprep.subr.bf16.mxu0 0
        %737 = vmatpush1.bf16.msra.mxu0 0
        %738 = vmatprep.subr.bf16.mxu0 0
        %739 = vmatpush1.bf16.msra.mxu0 0
        %740 = vmatprep.subr.bf16.mxu0 0
        %741 = vmatpush1.bf16.msra.mxu0 0
        %742 = vmatprep.subr.bf16.mxu0 0
        %743 = vmatpush1.bf16.msra.mxu0 0
        %744 = vmatprep.subr.bf16.mxu0 0
        %745 = vmatpush1.bf16.msra.mxu0 0
        %746 = vmatprep.mubr.bf16.mxu0 0
        %747 = vmatmul.mubr.bf16.gmra.mrb[0].mxu0 %v708
        %v748 = vpop.f32.mrb[0].mxu0
        %v749 = vadd.f32 0.0, %v748
        %v750 = vpop.f32.mrb[0].mxu0
        %v751 = vpop.f32.mrb[0].mxu0
        %v752 = vpop.f32.mrb[0].mxu0
        %753 = vdwg.mxu0
        %v754 = vmul.f32 %v749, 3.1622777
        %v755 = vpack.c.bf16 %v754, %v754
        %v756 = vld [vmem:[%s9] sm:$0xf]
        %v757 = vld [vmem:[%s9 + $0x4] sm:$0xf]
        %v758 = vld [vmem:[%s9 + $0x8] sm:$0xf]
        %v759 = vld [vmem:[%s10] sm:$0x1]
        %v761 = vlaneseq
        %v762 = vshrl.u32 %v761, 7
        %v763 = vsub.s32 0, %v762
        %v764 = vrot.slane %v759, %v763
        %v769 = vunpack.c.l.b16 %v756
        %v770 = vunpack.c.l.b16 %v757
        %v771 = vunpack.c.l.b16 %v758
        %v772 = vpack.c.b16 %v770, %v769
        %v773 = vpack.c.b16 %v771, %v771
        %v776 = vsel %vm639, %v755, 0
        %vm778 = vcmask 1043456
        %v780 = vsel %vm778, %v773, 0
        %782 = vmatprep.subr.bf16.mxu0 0
        %783 = vmatpush1.bf16.msra.mxu0 %v772
        %784 = vmatprep.subr.bf16.mxu0 0
        %785 = vmatpush1.bf16.msra.mxu0 %v780
        %786 = vmatprep.subr.bf16.mxu0 0
        %787 = vmatpush1.bf16.msra.mxu0 0
        %788 = vmatprep.subr.bf16.mxu0 0
        %789 = vmatpush1.bf16.msra.mxu0 0
        %790 = vmatprep.subr.bf16.mxu0 0
        %791 = vmatpush1.bf16.msra.mxu0 0
        %792 = vmatprep.subr.bf16.mxu0 0
        %793 = vmatpush1.bf16.msra.mxu0 0
        %794 = vmatprep.subr.bf16.mxu0 0
        %795 = vmatpush1.bf16.msra.mxu0 0
        %796 = vmatprep.subr.bf16.mxu0 0
        %797 = vmatpush1.bf16.msra.mxu0 0
        %798 = vmatprep.subr.bf16.mxu0 0
        %799 = vmatpush1.bf16.msra.mxu0 0
        %800 = vmatprep.subr.bf16.mxu0 0
        %801 = vmatpush1.bf16.msra.mxu0 0
        %802 = vmatprep.subr.bf16.mxu0 0
        %803 = vmatpush1.bf16.msra.mxu0 0
        %804 = vmatprep.subr.bf16.mxu0 0
        %805 = vmatpush1.bf16.msra.mxu0 0
        %806 = vmatprep.subr.bf16.mxu0 0
        %807 = vmatpush1.bf16.msra.mxu0 0
        %808 = vmatprep.subr.bf16.mxu0 0
        %809 = vmatpush1.bf16.msra.mxu0 0
        %810 = vmatprep.subr.bf16.mxu0 0
        %811 = vmatpush1.bf16.msra.mxu0 0
        %812 = vmatprep.subr.bf16.mxu0 0
        %813 = vmatpush1.bf16.msra.mxu0 0
        %814 = vmatprep.mubr.bf16.mxu0 0
        %815 = vmatmul.mubr.bf16.gmra.mrb[0].mxu0 %v776
        %v816 = vpop.f32.mrb[0].mxu0
        %v817 = vadd.f32 %v764, %v816
        %v818 = vpop.f32.mrb[0].mxu0
        %v819 = vpop.f32.mrb[0].mxu0
        %v820 = vpop.f32.mrb[0].mxu0
        %821 = vdwg.mxu0
        %822 = vst.msk [vmem:[%s462] sm:$0xff] %vm517, %v817
        %s823 = sand.u32 %s294, 1
        %s824 = scalar_lea.sflag [#allocation3], %s823
        %s825 = sand.u32 %s294, 1
        %s826 = smul.addr %s825, 8
        %s827 = scalar_lea.vmem [#allocation2], %s826
        %s828 = sand.u32 %s320, 1
        %s829 = scalar_lea.sflag [#allocation5], %s828
        %s830 = sand.u32 %s320, 1
        %s831 = smul.addr %s830, 8
        %s832 = scalar_lea.vmem [#allocation4], %s831
        // Predicated region
        $region65: #{tpu_custom_call.1} parent=63 // pred_check
          %p833 = pneg %p304
        $region66: #{tpu_custom_call.1} parent=63 // pred_check_branch
          %835 = sbr.rel (%p833) target = $region68
        $region67: #{tpu_custom_call.1} parent=63 // pred_region
          %s837 = ssub.s32 128, 128
          %838 = vsyncadd %s824, %s837
          %s839 = smul.addr %s30, 128
          %s840 = scalar_lea.hbm %s11, %s839
          %s842 = sshll.u32 %s827, 4
          %s843 = int_to_ptr.vmem [resolvable:$true] %s842
          %845 = dma.vmem_to_hbm [thread:$0]  %s843, 128, %s840, %s824
        $region68: #{tpu_custom_call.1} parent=63 // pred_fallthru
          _
        // Predicated region
        $region69: #{tpu_custom_call.1} parent=63 // pred_check
          %p846 = pneg %p330
        $region70: #{tpu_custom_call.1} parent=63 // pred_check_branch
          %848 = sbr.rel (%p846) target = $region72
        $region71: #{tpu_custom_call.1} parent=63 // pred_region
          %s850 = ssub.s32 128, 128
          %851 = vsyncadd %s829, %s850
          %s852 = smul.addr %s30, 128
          %s853 = scalar_lea.hbm %s12, %s852
          %s855 = sshll.u32 %s832, 4
          %s856 = int_to_ptr.vmem [resolvable:$true] %s855
          %858 = dma.vmem_to_hbm [thread:$0]  %s856, 128, %s853, %s829
        $region72: #{tpu_custom_call.1} parent=63 // pred_fallthru
          _
      $region64: #{tpu_custom_call.1} parent=5 // pred_fallthru
        _
      %p859 = scmp.le.s32.totalorder 2, %s25
      // Predicated region
      $region73: #{tpu_custom_call.1} parent=5 // pred_check
        %p860 = pneg %p859
      $region74: #{tpu_custom_call.1} parent=5 // pred_check_branch
        %862 = sbr.rel (%p860) target = $region76
      $region75: #{tpu_custom_call.1} parent=5 // pred_region
        %s863 = ssub.s32 %s25, 2
        // Predicated region
        $region77: #{tpu_custom_call.1} parent=75 // pred_check
          %p864 = pneg %p310
        $region78: #{tpu_custom_call.1} parent=75 // pred_check_branch
          %866 = sbr.rel (%p864) target = $region80
        $region79: #{tpu_custom_call.1} parent=75 // pred_region
          %s867 = sand.u32 %s295, 1
          %s868 = scalar_lea.sflag [#allocation3], %s867
          %s869 = sand.u32 %s295, 1
          %s870 = smul.addr %s869, 8
          %s871 = scalar_lea.vmem [#allocation2], %s870
          %872 = dma.done %s868, 128
        $region80: #{tpu_custom_call.1} parent=75 // pred_fallthru
          _
        // Predicated region
        $region81: #{tpu_custom_call.1} parent=75 // pred_check
          %p873 = pneg %p336
        $region82: #{tpu_custom_call.1} parent=75 // pred_check_branch
          %875 = sbr.rel (%p873) target = $region84
        $region83: #{tpu_custom_call.1} parent=75 // pred_region
          %s876 = sand.u32 %s321, 1
          %s877 = scalar_lea.sflag [#allocation5], %s876
          %s878 = sand.u32 %s321, 1
          %s879 = smul.addr %s878, 8
          %s880 = scalar_lea.vmem [#allocation4], %s879
          %881 = dma.done %s877, 128
        $region84: #{tpu_custom_call.1} parent=75 // pred_fallthru
          _
      $region76: #{tpu_custom_call.1} parent=5 // pred_fallthru
        _
    $region6: #{tpu_custom_call.1} parent=1 // loop_footer
      %s29 = sadd.s32 1, %s25
    $region7: #{tpu_custom_call.1} parent=1 // loop_footer_branch
      %24 = sbr.rel target = $region3
    $region8: #{tpu_custom_call.1} parent=1 // loop_exit
      _
    %882 = vsyncpa [#allocation3], 1
    %s883 = scalar_lea.sflag [#allocation3], 1
    %884 = vsyncpa %s883, 1
    %885 = vsyncpa [#allocation5], 1
    %s886 = scalar_lea.sflag [#allocation5], 1
    %887 = vsyncpa %s886, 1

</llo_original>
